<compile_context>
chip_gen: v5e
topology: v5e:2x2
jax: 0.10.0
libtpu: 0.0.40
codegen_flags: <defaults>
</compile_context>

<pallas_src>
import functools

import numpy as np
import jax
import jax.numpy as jnp
from jax.experimental import pallas as pl
from jax.experimental.pallas import tpu as pltpu

ENC_H1 = 128
ENC_H2 = 64
DEC_H1 = 64
DEC_H2 = 128

MAX_BLOCK_B = 2048


def autoencoder_kernel(x_ref,
                       w1_ref, b1_ref, w2_ref, b2_ref,
                       w34_ref, b34_ref, w5_ref, b5_ref,
                       w6_ref, b6_ref,
                       out_ref):
    # Matmuls hit the MXU (f32 accumulate); bias-add / ReLU are VPU elementwise.
    wdt = w1_ref.dtype
    x = x_ref[...].astype(wdt)            # free cast; keeps MXU on the bf16 path

    h = jnp.dot(x, w1_ref[...], preferred_element_type=jnp.float32)
    h = jnp.maximum(h + b1_ref[...].astype(jnp.float32), 0.0).astype(wdt)

    h = jnp.dot(h, w2_ref[...], preferred_element_type=jnp.float32)
    h = jnp.maximum(h + b2_ref[...].astype(jnp.float32), 0.0).astype(wdt)

    # Latent projection folded: relu((h@W3 + b3)@W4 + b4) == relu(h@W34 + b34)
    h = jnp.dot(h, w34_ref[...], preferred_element_type=jnp.float32)
    h = jnp.maximum(h + b34_ref[...].astype(jnp.float32), 0.0).astype(wdt)

    h = jnp.dot(h, w5_ref[...], preferred_element_type=jnp.float32)
    h = jnp.maximum(h + b5_ref[...].astype(jnp.float32), 0.0).astype(wdt)

    y = jnp.dot(h, w6_ref[...], preferred_element_type=jnp.float32)
    y = y + b6_ref[...].astype(jnp.float32)
    out_ref[...] = y.astype(out_ref.dtype)


def _round_up(n, m):
    return ((n + m - 1) // m) * m


def _pick_out_pad(output_dim):
    # Pad the output lane dim only when it's large and just off a 128 multiple
    # (<=12.5% extra write bytes); otherwise masked stores are cheaper than
    # the extra HBM traffic on this memory-bound kernel.
    if output_dim >= 128 and output_dim % 128 != 0:
        padded = _round_up(output_dim, 128)
        if (padded - output_dim) * 8 <= output_dim:
            return padded
    return output_dim


def prepare_params(params, compute_dtype=jnp.bfloat16):
    """One-time parameter prep (outside the per-call forward).

    Folds the activation-free latent pair (W3,b3)/(W4,b4) into (W34,b34),
    optionally lane-pads the output layer, and casts to compute_dtype
    (fold is done in the original f32 for precision).
    Returns (prepped_params, output_dim).
    """
    w1, b1, w2, b2, w3, b3, w4, b4, w5, b5, w6, b6 = params
    output_dim = w6.shape[1]

    w34 = jnp.dot(w3, w4, preferred_element_type=jnp.float32).astype(w3.dtype)
    b34 = (jnp.dot(b3, w4, preferred_element_type=jnp.float32) + b4).astype(b4.dtype)

    out_pad = _pick_out_pad(output_dim)
    if out_pad != output_dim:
        w6 = jnp.pad(w6, ((0, 0), (0, out_pad - output_dim)))
        b6 = jnp.pad(b6, ((0, 0), (0, out_pad - output_dim)))

    prepped = tuple(p.astype(compute_dtype)
                    for p in (w1, b1, w2, b2, w34, b34, w5, b5, w6, b6))
    return prepped, output_dim


@functools.partial(jax.jit, static_argnames=("output_dim",))
def autoencoder_forward(x, prepped, *, output_dim):
    w1, b1, w2, b2, w34, b34, w5, b5, w6, b6 = prepped
    B, input_dim = x.shape
    out_pad = w6.shape[1]
    out_dtype = x.dtype
    compute_dtype = w1.dtype

    # Batch tile: large (amortize ~0.35us/step), but split so the grid has at
    # least 2 steps whenever possible (keeps both v7x TensorCores busy).
    if B > 8:
        block_b = min(MAX_BLOCK_B, _round_up((B + 1) // 2, 8))
    else:
        block_b = _round_up(max(B, 1), 8)
    grid_b = pl.cdiv(B, block_b)

    # Explicit scoped-VMEM limit sized from the actual tile footprint
    # (double-buffered x/out tiles + resident weights + headroom), capped at
    # 64 MiB so it stays within v7x physical VMEM.
    csize = np.dtype(compute_dtype).itemsize
    osize = np.dtype(out_dtype).itemsize
    x_tile = block_b * input_dim * csize
    o_tile = block_b * out_pad * osize
    w_bytes = sum(int(np.prod(p.shape)) * csize for p in prepped)
    vmem_need = 2 * (x_tile + o_tile) + 2 * w_bytes + (4 << 20)
    vmem_limit = int(min(max(vmem_need, 32 << 20), 64 << 20))

    const_map = lambda i: (0, 0)
    in_specs = [pl.BlockSpec((block_b, input_dim), lambda i: (i, 0))]
    in_specs += [pl.BlockSpec(p.shape, const_map) for p in prepped]

    y = pl.pallas_call(
        autoencoder_kernel,
        out_shape=jax.ShapeDtypeStruct((B, out_pad), out_dtype),
        grid_spec=pltpu.PrefetchScalarGridSpec(
            num_scalar_prefetch=0,
            grid=(grid_b,),
            in_specs=in_specs,
            out_specs=pl.BlockSpec((block_b, out_pad), lambda i: (i, 0)),
        ),
        compiler_params=pltpu.CompilerParams(
            dimension_semantics=("parallel",),
            vmem_limit_bytes=vmem_limit,
        ),
    )(x, *prepped)

    if out_pad != output_dim:
        y = y[:, :output_dim]
    return y


def init_params(key, input_dim, latent_dim, dtype=jnp.float32):
    """Deterministic init mirroring nn.Linear's uniform(-1/sqrt(fan_in), +1/sqrt(fan_in))."""
    def linear(key, fan_in, fan_out):
        kw, kb = jax.random.split(key)
        bound = 1.0 / jnp.sqrt(fan_in)
        w = jax.random.uniform(kw, (fan_in, fan_out), dtype, -bound, bound)
        b = jax.random.uniform(kb, (1, fan_out), dtype, -bound, bound)
        return w, b

    keys = jax.random.split(key, 6)
    w1, b1 = linear(keys[0], input_dim, ENC_H1)   # encoder
    w2, b2 = linear(keys[1], ENC_H1, ENC_H2)
    w3, b3 = linear(keys[2], ENC_H2, latent_dim)
    w4, b4 = linear(keys[3], latent_dim, DEC_H1)  # decoder
    w5, b5 = linear(keys[4], DEC_H1, DEC_H2)
    w6, b6 = linear(keys[5], DEC_H2, input_dim)
    return (w1, b1, w2, b2, w3, b3, w4, b4, w5, b5, w6, b6)


def autoencoder_ref(x, params):
    """Pure-JAX reference of the PyTorch Autoencoder forward."""
    w1, b1, w2, b2, w3, b3, w4, b4, w5, b5, w6, b6 = params
    h = jnp.maximum(x @ w1 + b1, 0.0)
    h = jnp.maximum(h @ w2 + b2, 0.0)
    z = h @ w3 + b3
    h = jnp.maximum(z @ w4 + b4, 0.0)
    h = jnp.maximum(h @ w5 + b5, 0.0)
    return h @ w6 + b6


if __name__ == "__main__":
    key = jax.random.PRNGKey(0)
    k_x, k_p, k_x2 = jax.random.split(key, 3)

    batch, input_dim, latent_dim = 8, 32, 16
    x = jax.random.normal(k_x, (batch, input_dim), jnp.float32)
    params = init_params(k_p, input_dim, latent_dim)
    y_ref = autoencoder_ref(x, params)

    # f32 compute path: near-exact (only the W3@W4 fold reassociates fp ops).
    prepped_f32, out_dim = prepare_params(params, compute_dtype=jnp.float32)
    y_f32 = jax.block_until_ready(autoencoder_forward(x, prepped_f32, output_dim=out_dim))
    assert y_f32.shape == (batch, input_dim), f"bad shape {y_f32.shape}"
    assert jnp.allclose(y_f32, y_ref, atol=2e-4, rtol=2e-4), "f32 mismatch vs reference"

    # bf16 compute path (bf16 weights / intermediates, f32 accumulate): relaxed tol.
    prepped_bf16, out_dim = prepare_params(params, compute_dtype=jnp.bfloat16)
    y_bf16 = jax.block_until_ready(autoencoder_forward(x, prepped_bf16, output_dim=out_dim))
    assert y_bf16.shape == (batch, input_dim), f"bad shape {y_bf16.shape}"
    assert jnp.allclose(y_bf16.astype(jnp.float32), y_ref, atol=6e-2, rtol=6e-2), \
        "bf16 mismatch vs reference"

    # Larger batch: exercises multi-step grid (both TCs on v7x) + tail clipping.
    x2 = jax.random.normal(k_x2, (200, input_dim), jnp.float32)
    y2 = jax.block_until_ready(autoencoder_forward(x2, prepped_f32, output_dim=out_dim))
    assert y2.shape == (200, input_dim)
    assert jnp.allclose(y2, autoencoder_ref(x2, params), atol=2e-4, rtol=2e-4), \
        "multi-tile mismatch vs reference"

    print("KERNEL_OK")
</pallas_src>

<mosaic_0001>
module attributes {stable_mosaic.version = 11 : i64} {
  func.func @autoencoder_kernel(%arg0: i32, %arg1: memref<8x32xf32, #tpu.memory_space<vmem>>, %arg2: memref<32x128xf32, #tpu.memory_space<vmem>>, %arg3: memref<1x128xf32, #tpu.memory_space<vmem>>, %arg4: memref<128x64xf32, #tpu.memory_space<vmem>>, %arg5: memref<1x64xf32, #tpu.memory_space<vmem>>, %arg6: memref<64x64xf32, #tpu.memory_space<vmem>>, %arg7: memref<1x64xf32, #tpu.memory_space<vmem>>, %arg8: memref<64x128xf32, #tpu.memory_space<vmem>>, %arg9: memref<1x128xf32, #tpu.memory_space<vmem>>, %arg10: memref<128x32xf32, #tpu.memory_space<vmem>>, %arg11: memref<1x32xf32, #tpu.memory_space<vmem>>, %arg12: memref<8x32xf32, #tpu.memory_space<vmem>>) attributes {dimension_semantics = [#tpu.dimension_semantics<parallel>], iteration_bounds = array<i64: 1>, scalar_prefetch = 0 : i64, scratch_operands = 0 : i64, tpu.core_type = #tpu.core_type<tc>, window_params = [{transform_indices = @transform_0, window_bounds = array<i64: 8, 32>}, {pipeline_mode = #tpu.pipeline_mode<synchronous>, transform_indices = @transform_1, window_bounds = array<i64: 32, 128>}, {pipeline_mode = #tpu.pipeline_mode<synchronous>, transform_indices = @transform_2, window_bounds = array<i64: 1, 128>}, {pipeline_mode = #tpu.pipeline_mode<synchronous>, transform_indices = @transform_3, window_bounds = array<i64: 128, 64>}, {pipeline_mode = #tpu.pipeline_mode<synchronous>, transform_indices = @transform_4, window_bounds = array<i64: 1, 64>}, {pipeline_mode = #tpu.pipeline_mode<synchronous>, transform_indices = @transform_5, window_bounds = array<i64: 64, 64>}, {pipeline_mode = #tpu.pipeline_mode<synchronous>, transform_indices = @transform_6, window_bounds = array<i64: 1, 64>}, {pipeline_mode = #tpu.pipeline_mode<synchronous>, transform_indices = @transform_7, window_bounds = array<i64: 64, 128>}, {pipeline_mode = #tpu.pipeline_mode<synchronous>, transform_indices = @transform_8, window_bounds = array<i64: 1, 128>}, {pipeline_mode = #tpu.pipeline_mode<synchronous>, transform_indices = @transform_9, window_bounds = array<i64: 128, 32>}, {pipeline_mode = #tpu.pipeline_mode<synchronous>, transform_indices = @transform_10, window_bounds = array<i64: 1, 32>}, {transform_indices = @transform_11, window_bounds = array<i64: 8, 32>}]} {
    %c0 = arith.constant 0 : index
    %c0_0 = arith.constant 0 : index
    %0 = vector.load %arg1[%c0, %c0_0] : memref<8x32xf32, #tpu.memory_space<vmem>>, vector<8x32xf32>
    %c0_1 = arith.constant 0 : index
    %c0_2 = arith.constant 0 : index
    %1 = vector.load %arg2[%c0_1, %c0_2] : memref<32x128xf32, #tpu.memory_space<vmem>>, vector<32x128xf32>
    %cst = arith.constant dense<0.000000e+00> : vector<8x128xf32>
    %2 = tpu.matmul %0, %1, %cst {dimension_numbers = #tpu.dot_dimension_numbers<[1], [0], [0], [1], [0, 0, 1, 1], [], []>} : vector<8x32xf32>, vector<32x128xf32>, vector<8x128xf32> -> vector<8x128xf32>
    %c0_3 = arith.constant 0 : index
    %c0_4 = arith.constant 0 : index
    %3 = vector.load %arg3[%c0_3, %c0_4] : memref<1x128xf32, #tpu.memory_space<vmem>>, vector<1x128xf32>
    %4 = vector.broadcast %3 : vector<1x128xf32> to vector<8x128xf32>
    %5 = arith.addf %2, %4 : vector<8x128xf32>
    %cst_5 = arith.constant 0.000000e+00 : f32
    %6 = vector.broadcast %cst_5 : f32 to vector<8x128xf32>
    %7 = arith.maximumf %5, %6 : vector<8x128xf32>
    %c0_6 = arith.constant 0 : index
    %c0_7 = arith.constant 0 : index
    %8 = vector.load %arg4[%c0_6, %c0_7] : memref<128x64xf32, #tpu.memory_space<vmem>>, vector<128x64xf32>
    %cst_8 = arith.constant dense<0.000000e+00> : vector<8x64xf32>
    %9 = tpu.matmul %7, %8, %cst_8 {dimension_numbers = #tpu.dot_dimension_numbers<[1], [0], [0], [1], [0, 0, 1, 1], [], []>} : vector<8x128xf32>, vector<128x64xf32>, vector<8x64xf32> -> vector<8x64xf32>
    %c0_9 = arith.constant 0 : index
    %c0_10 = arith.constant 0 : index
    %10 = vector.load %arg5[%c0_9, %c0_10] : memref<1x64xf32, #tpu.memory_space<vmem>>, vector<1x64xf32>
    %11 = vector.broadcast %10 : vector<1x64xf32> to vector<8x64xf32>
    %12 = arith.addf %9, %11 : vector<8x64xf32>
    %cst_11 = arith.constant 0.000000e+00 : f32
    %13 = vector.broadcast %cst_11 : f32 to vector<8x64xf32>
    %14 = arith.maximumf %12, %13 : vector<8x64xf32>
    %c0_12 = arith.constant 0 : index
    %c0_13 = arith.constant 0 : index
    %15 = vector.load %arg6[%c0_12, %c0_13] : memref<64x64xf32, #tpu.memory_space<vmem>>, vector<64x64xf32>
    %cst_14 = arith.constant dense<0.000000e+00> : vector<8x64xf32>
    %16 = tpu.matmul %14, %15, %cst_14 {dimension_numbers = #tpu.dot_dimension_numbers<[1], [0], [0], [1], [0, 0, 1, 1], [], []>} : vector<8x64xf32>, vector<64x64xf32>, vector<8x64xf32> -> vector<8x64xf32>
    %c0_15 = arith.constant 0 : index
    %c0_16 = arith.constant 0 : index
    %17 = vector.load %arg7[%c0_15, %c0_16] : memref<1x64xf32, #tpu.memory_space<vmem>>, vector<1x64xf32>
    %18 = vector.broadcast %17 : vector<1x64xf32> to vector<8x64xf32>
    %19 = arith.addf %16, %18 : vector<8x64xf32>
    %cst_17 = arith.constant 0.000000e+00 : f32
    %20 = vector.broadcast %cst_17 : f32 to vector<8x64xf32>
    %21 = arith.maximumf %19, %20 : vector<8x64xf32>
    %c0_18 = arith.constant 0 : index
    %c0_19 = arith.constant 0 : index
    %22 = vector.load %arg8[%c0_18, %c0_19] : memref<64x128xf32, #tpu.memory_space<vmem>>, vector<64x128xf32>
    %cst_20 = arith.constant dense<0.000000e+00> : vector<8x128xf32>
    %23 = tpu.matmul %21, %22, %cst_20 {dimension_numbers = #tpu.dot_dimension_numbers<[1], [0], [0], [1], [0, 0, 1, 1], [], []>} : vector<8x64xf32>, vector<64x128xf32>, vector<8x128xf32> -> vector<8x128xf32>
    %c0_21 = arith.constant 0 : index
    %c0_22 = arith.constant 0 : index
    %24 = vector.load %arg9[%c0_21, %c0_22] : memref<1x128xf32, #tpu.memory_space<vmem>>, vector<1x128xf32>
    %25 = vector.broadcast %24 : vector<1x128xf32> to vector<8x128xf32>
    %26 = arith.addf %23, %25 : vector<8x128xf32>
    %cst_23 = arith.constant 0.000000e+00 : f32
    %27 = vector.broadcast %cst_23 : f32 to vector<8x128xf32>
    %28 = arith.maximumf %26, %27 : vector<8x128xf32>
    %c0_24 = arith.constant 0 : index
    %c0_25 = arith.constant 0 : index
    %29 = vector.load %arg10[%c0_24, %c0_25] : memref<128x32xf32, #tpu.memory_space<vmem>>, vector<128x32xf32>
    %cst_26 = arith.constant dense<0.000000e+00> : vector<8x32xf32>
    %30 = tpu.matmul %28, %29, %cst_26 {dimension_numbers = #tpu.dot_dimension_numbers<[1], [0], [0], [1], [0, 0, 1, 1], [], []>} : vector<8x128xf32>, vector<128x32xf32>, vector<8x32xf32> -> vector<8x32xf32>
    %c0_27 = arith.constant 0 : index
    %c0_28 = arith.constant 0 : index
    %31 = vector.load %arg11[%c0_27, %c0_28] : memref<1x32xf32, #tpu.memory_space<vmem>>, vector<1x32xf32>
    %32 = vector.broadcast %31 : vector<1x32xf32> to vector<8x32xf32>
    %33 = arith.addf %30, %32 : vector<8x32xf32>
    %c0_29 = arith.constant 0 : index
    %c0_30 = arith.constant 0 : index
    %34 = vector.load %arg12[%c0_29, %c0_30] : memref<8x32xf32, #tpu.memory_space<vmem>>, vector<8x32xf32>
    tpu.vector_store %arg12[%c0_29, %c0_30], %33 {strides = array<i32>} : memref<8x32xf32, #tpu.memory_space<vmem>>, vector<8x32xf32>,
    return
  }
  func.func @transform_0(%arg0: i32) -> (i32, i32) {
    %c0_i32 = arith.constant 0 : i32
    %c0_i32_0 = arith.constant 0 : i32
    return %arg0, %c0_i32 : i32, i32
  }
  func.func @transform_1(%arg0: i32) -> (i32, i32) {
    %c0_i32 = arith.constant 0 : i32
    %c0_i32_0 = arith.constant 0 : i32
    %c0_i32_1 = arith.constant 0 : i32
    return %c0_i32, %c0_i32_0 : i32, i32
  }
  func.func @transform_2(%arg0: i32) -> (i32, i32) {
    %c0_i32 = arith.constant 0 : i32
    %c0_i32_0 = arith.constant 0 : i32
    %c0_i32_1 = arith.constant 0 : i32
    return %c0_i32, %c0_i32_0 : i32, i32
  }
  func.func @transform_3(%arg0: i32) -> (i32, i32) {
    %c0_i32 = arith.constant 0 : i32
    %c0_i32_0 = arith.constant 0 : i32
    %c0_i32_1 = arith.constant 0 : i32
    return %c0_i32, %c0_i32_0 : i32, i32
  }
  func.func @transform_4(%arg0: i32) -> (i32, i32) {
    %c0_i32 = arith.constant 0 : i32
    %c0_i32_0 = arith.constant 0 : i32
    %c0_i32_1 = arith.constant 0 : i32
    return %c0_i32, %c0_i32_0 : i32, i32
  }
  func.func @transform_5(%arg0: i32) -> (i32, i32) {
    %c0_i32 = arith.constant 0 : i32
    %c0_i32_0 = arith.constant 0 : i32
    %c0_i32_1 = arith.constant 0 : i32
    return %c0_i32, %c0_i32_0 : i32, i32
  }
  func.func @transform_6(%arg0: i32) -> (i32, i32) {
    %c0_i32 = arith.constant 0 : i32
    %c0_i32_0 = arith.constant 0 : i32
    %c0_i32_1 = arith.constant 0 : i32
    return %c0_i32, %c0_i32_0 : i32, i32
  }
  func.func @transform_7(%arg0: i32) -> (i32, i32) {
    %c0_i32 = arith.constant 0 : i32
    %c0_i32_0 = arith.constant 0 : i32
    %c0_i32_1 = arith.constant 0 : i32
    return %c0_i32, %c0_i32_0 : i32, i32
  }
  func.func @transform_8(%arg0: i32) -> (i32, i32) {
    %c0_i32 = arith.constant 0 : i32
    %c0_i32_0 = arith.constant 0 : i32
    %c0_i32_1 = arith.constant 0 : i32
    return %c0_i32, %c0_i32_0 : i32, i32
  }
  func.func @transform_9(%arg0: i32) -> (i32, i32) {
    %c0_i32 = arith.constant 0 : i32
    %c0_i32_0 = arith.constant 0 : i32
    %c0_i32_1 = arith.constant 0 : i32
    return %c0_i32, %c0_i32_0 : i32, i32
  }
  func.func @transform_10(%arg0: i32) -> (i32, i32) {
    %c0_i32 = arith.constant 0 : i32
    %c0_i32_0 = arith.constant 0 : i32
    %c0_i32_1 = arith.constant 0 : i32
    return %c0_i32, %c0_i32_0 : i32, i32
  }
  func.func @transform_11(%arg0: i32) -> (i32, i32) {
    %c0_i32 = arith.constant 0 : i32
    %c0_i32_0 = arith.constant 0 : i32
    return %arg0, %c0_i32 : i32, i32
  }
}

</mosaic_0001>

<llo_original>
// kernel: autoencoder_forward.1
$region0: #{autoencoder_forward.1}
  #allocation0 [shape = 'u32[]', space=smem, size = 0x4, offset = 0x4, fixed_abs, tag = 'smem constant byte address 0x4 - core index']
  #allocation1 [shape = 'u32[72,128]{1,0:T(1,128)}', space=vmem, size = 0x9000, scoped, tag = 'internal scratch']
  %s0 = inlined_call_operand.vmem [shape: f32[8,32], index: 0, kind: input, shape index: {}]
  %s1 = inlined_call_operand.vmem [shape: f32[32,128], index: 1, kind: input, shape index: {}]
  %s2 = inlined_call_operand.vmem [shape: f32[1,128], index: 2, kind: input, shape index: {}]
  %s3 = inlined_call_operand.vmem [shape: f32[128,64], index: 3, kind: input, shape index: {}]
  %s4 = inlined_call_operand.vmem [shape: f32[1,64], index: 4, kind: input, shape index: {}]
  %s5 = inlined_call_operand.vmem [shape: f32[64,64], index: 5, kind: input, shape index: {}]
  %s6 = inlined_call_operand.vmem [shape: f32[1,64], index: 6, kind: input, shape index: {}]
  %s7 = inlined_call_operand.vmem [shape: f32[64,128], index: 7, kind: input, shape index: {}]
  %s8 = inlined_call_operand.vmem [shape: f32[1,128], index: 8, kind: input, shape index: {}]
  %s9 = inlined_call_operand.vmem [shape: f32[128,32], index: 9, kind: input, shape index: {}]
  %s10 = inlined_call_operand.vmem [shape: f32[1,32], index: 10, kind: input, shape index: {}]
  %s11 = inlined_call_operand.hbm [shape: f32[8,32], index: 11, kind: output, shape index: {}]
  %s12 = sld [smem:[#allocation0]]
  $region54: #{autoencoder_forward.1} parent=0
    _
  %s14 = ssub.s32 1, %s12
  %s15 = scalar_select 0, %s14, %s12
  $region1: #{autoencoder_forward.1} parent=0
    #allocation2 [shape = 'u8[4096]{0}', space=vmem, size = 0x1000, scoped, tag = 'output window, operand 0, single buffered']
    #allocation3 [shape = 's32[1]{0}', space=sflag, size = 0x4, scoped, tag = 'scoped memory for autoencoder_forward.1']
    %16 = vsyncpa [#allocation3], 0
    // Predicated region
    $region2: #{autoencoder_forward.1} parent=1 // pred_check
      _
    $region3: #{autoencoder_forward.1} parent=1 // pred_check_branch
      %18 = sbr.rel (0) target = $region5
    $region4: #{autoencoder_forward.1} parent=1 // pred_region
      _
    $region5: #{autoencoder_forward.1} parent=1 // pred_fallthru
      _
    // Predicated region
    $region6: #{autoencoder_forward.1} parent=1 // pred_check
      _
    $region7: #{autoencoder_forward.1} parent=1 // pred_check_branch
      %20 = sbr.rel (0) target = $region9
    $region8: #{autoencoder_forward.1} parent=1 // pred_region
      _
    $region9: #{autoencoder_forward.1} parent=1 // pred_fallthru
      _
    // Predicated region
    $region10: #{autoencoder_forward.1} parent=1 // pred_check
      _
    $region11: #{autoencoder_forward.1} parent=1 // pred_check_branch
      %22 = sbr.rel (0) target = $region13
    $region12: #{autoencoder_forward.1} parent=1 // pred_region
      _
    $region13: #{autoencoder_forward.1} parent=1 // pred_fallthru
      _
    // Predicated region
    $region14: #{autoencoder_forward.1} parent=1 // pred_check
      _
    $region15: #{autoencoder_forward.1} parent=1 // pred_check_branch
      %24 = sbr.rel (0) target = $region17
    $region16: #{autoencoder_forward.1} parent=1 // pred_region
      _
    $region17: #{autoencoder_forward.1} parent=1 // pred_fallthru
      _
    // Predicated region
    $region18: #{autoencoder_forward.1} parent=1 // pred_check
      _
    $region19: #{autoencoder_forward.1} parent=1 // pred_check_branch
      %26 = sbr.rel (0) target = $region21
    $region20: #{autoencoder_forward.1} parent=1 // pred_region
      _
    $region21: #{autoencoder_forward.1} parent=1 // pred_fallthru
      _
    // Predicated region
    $region22: #{autoencoder_forward.1} parent=1 // pred_check
      _
    $region23: #{autoencoder_forward.1} parent=1 // pred_check_branch
      %28 = sbr.rel (0) target = $region25
    $region24: #{autoencoder_forward.1} parent=1 // pred_region
      _
    $region25: #{autoencoder_forward.1} parent=1 // pred_fallthru
      _
    // Predicated region
    $region26: #{autoencoder_forward.1} parent=1 // pred_check
      _
    $region27: #{autoencoder_forward.1} parent=1 // pred_check_branch
      %30 = sbr.rel (0) target = $region29
    $region28: #{autoencoder_forward.1} parent=1 // pred_region
      _
    $region29: #{autoencoder_forward.1} parent=1 // pred_fallthru
      _
    // Predicated region
    $region30: #{autoencoder_forward.1} parent=1 // pred_check
      _
    $region31: #{autoencoder_forward.1} parent=1 // pred_check_branch
      %32 = sbr.rel (0) target = $region33
    $region32: #{autoencoder_forward.1} parent=1 // pred_region
      _
    $region33: #{autoencoder_forward.1} parent=1 // pred_fallthru
      _
    // Predicated region
    $region34: #{autoencoder_forward.1} parent=1 // pred_check
      _
    $region35: #{autoencoder_forward.1} parent=1 // pred_check_branch
      %34 = sbr.rel (0) target = $region37
    $region36: #{autoencoder_forward.1} parent=1 // pred_region
      _
    $region37: #{autoencoder_forward.1} parent=1 // pred_fallthru
      _
    // Predicated region
    $region38: #{autoencoder_forward.1} parent=1 // pred_check
      _
    $region39: #{autoencoder_forward.1} parent=1 // pred_check_branch
      %36 = sbr.rel (0) target = $region41
    $region40: #{autoencoder_forward.1} parent=1 // pred_region
      _
    $region41: #{autoencoder_forward.1} parent=1 // pred_fallthru
      _
    // Predicated region
    $region42: #{autoencoder_forward.1} parent=1 // pred_check
      _
    $region43: #{autoencoder_forward.1} parent=1 // pred_check_branch
      %38 = sbr.rel (0) target = $region45
    $region44: #{autoencoder_forward.1} parent=1 // pred_region
      _
    $region45: #{autoencoder_forward.1} parent=1 // pred_fallthru
      _
    %v39 = vld [vmem:[%s0] sm:$0xff]
    %v40 = vld [vmem:[%s1] sm:$0xff]
    %v41 = vld [vmem:[%s1 + $0x8] sm:$0xff]
    %v42 = vld [vmem:[%s1 + $0x10] sm:$0xff]
    %v43 = vld [vmem:[%s1 + $0x18] sm:$0xff]
    %v44 = vld [vmem:[%s2] sm:$0x1]
    %v46 = vperm.slane %v44, 0
    %vm48 = vcmask 261120
    %v50 = vsel %vm48, %v39, 0
    %52 = vmatpush.msra.mxu0 0.0
    %53 = vmatpush.msra.mxu0 0.0
    %54 = vmatpush.msra.mxu0 0.0
    %55 = vmatpush.msra.mxu0 0.0
    %56 = vmatpush.msra.mxu0 0.0
    %57 = vmatpush.msra.mxu0 0.0
    %58 = vmatpush.msra.mxu0 0.0
    %59 = vmatpush.msra.mxu0 0.0
    %60 = vmatpush.msra.mxu0 0.0
    %61 = vmatpush.msra.mxu0 0.0
    %62 = vmatpush.msra.mxu0 0.0
    %63 = vmatpush.msra.mxu0 0.0
    %64 = vmatpush.msra.mxu0 %v43
    %65 = vmatpush.msra.mxu0 %v42
    %66 = vmatpush.msra.mxu0 %v41
    %67 = vmatpush.msra.mxu0 %v40
    %68 = vmatmul.f32.gmra.mxu0 %v50
    %v69 = vpop.f32.mrf.mxu0
    %v70 = vadd.f32 %v46, %v69
    %71 = vdwg.mxu0
    %v72 = vmax.f32 %v70, 0.0
    %v73 = vld [vmem:[%s3] sm:$0xff]
    %v74 = vld [vmem:[%s3 + $0x8] sm:$0xff]
    %v75 = vld [vmem:[%s3 + $0x10] sm:$0xff]
    %v76 = vld [vmem:[%s3 + $0x18] sm:$0xff]
    %v77 = vld [vmem:[%s3 + $0x20] sm:$0xff]
    %v78 = vld [vmem:[%s3 + $0x28] sm:$0xff]
    %v79 = vld [vmem:[%s3 + $0x30] sm:$0xff]
    %v80 = vld [vmem:[%s3 + $0x38] sm:$0xff]
    %v81 = vld [vmem:[%s3 + $0x40] sm:$0xff]
    %v82 = vld [vmem:[%s3 + $0x48] sm:$0xff]
    %v83 = vld [vmem:[%s3 + $0x50] sm:$0xff]
    %v84 = vld [vmem:[%s3 + $0x58] sm:$0xff]
    %v85 = vld [vmem:[%s3 + $0x60] sm:$0xff]
    %v86 = vld [vmem:[%s3 + $0x68] sm:$0xff]
    %v87 = vld [vmem:[%s3 + $0x70] sm:$0xff]
    %v88 = vld [vmem:[%s3 + $0x78] sm:$0xff]
    %v89 = vld [vmem:[%s4] sm:$0x1]
    %v91 = vperm.slane %v89, 0
    %93 = vmatpush.msra.mxu0 %v88
    %94 = vmatpush.msra.mxu0 %v87
    %95 = vmatpush.msra.mxu0 %v86
    %96 = vmatpush.msra.mxu0 %v85
    %97 = vmatpush.msra.mxu0 %v84
    %98 = vmatpush.msra.mxu0 %v83
    %99 = vmatpush.msra.mxu0 %v82
    %100 = vmatpush.msra.mxu0 %v81
    %101 = vmatpush.msra.mxu0 %v80
    %102 = vmatpush.msra.mxu0 %v79
    %103 = vmatpush.msra.mxu0 %v78
    %104 = vmatpush.msra.mxu0 %v77
    %105 = vmatpush.msra.mxu0 %v76
    %106 = vmatpush.msra.mxu0 %v75
    %107 = vmatpush.msra.mxu0 %v74
    %108 = vmatpush.msra.mxu0 %v73
    %109 = vmatmul.f32.gmra.mxu0 %v72
    %v110 = vpop.f32.mrf.mxu0
    %v111 = vadd.f32 %v91, %v110
    %112 = vdwg.mxu0
    %v113 = vmax.f32 %v111, 0.0
    %v114 = vld [vmem:[%s5] sm:$0xff]
    %v115 = vld [vmem:[%s5 + $0x8] sm:$0xff]
    %v116 = vld [vmem:[%s5 + $0x10] sm:$0xff]
    %v117 = vld [vmem:[%s5 + $0x18] sm:$0xff]
    %v118 = vld [vmem:[%s5 + $0x20] sm:$0xff]
    %v119 = vld [vmem:[%s5 + $0x28] sm:$0xff]
    %v120 = vld [vmem:[%s5 + $0x30] sm:$0xff]
    %v121 = vld [vmem:[%s5 + $0x38] sm:$0xff]
    %v122 = vld [vmem:[%s6] sm:$0x1]
    %v124 = vperm.slane %v122, 0
    %vm126 = vcmask 523264
    %v128 = vsel %vm126, %v113, 0
    %130 = vmatpush.msra.mxu0 0.0
    %131 = vmatpush.msra.mxu0 0.0
    %132 = vmatpush.msra.mxu0 0.0
    %133 = vmatpush.msra.mxu0 0.0
    %134 = vmatpush.msra.mxu0 0.0
    %135 = vmatpush.msra.mxu0 0.0
    %136 = vmatpush.msra.mxu0 0.0
    %137 = vmatpush.msra.mxu0 0.0
    %138 = vmatpush.msra.mxu0 %v121
    %139 = vmatpush.msra.mxu0 %v120
    %140 = vmatpush.msra.mxu0 %v119
    %141 = vmatpush.msra.mxu0 %v118
    %142 = vmatpush.msra.mxu0 %v117
    %143 = vmatpush.msra.mxu0 %v116
    %144 = vmatpush.msra.mxu0 %v115
    %145 = vmatpush.msra.mxu0 %v114
    %146 = vmatmul.f32.gmra.mxu0 %v128
    %v147 = vpop.f32.mrf.mxu0
    %v148 = vadd.f32 %v124, %v147
    %149 = vdwg.mxu0
    %v150 = vmax.f32 %v148, 0.0
    %v151 = vld [vmem:[%s7] sm:$0xff]
    %v152 = vld [vmem:[%s7 + $0x8] sm:$0xff]
    %v153 = vld [vmem:[%s7 + $0x10] sm:$0xff]
    %v154 = vld [vmem:[%s7 + $0x18] sm:$0xff]
    %v155 = vld [vmem:[%s7 + $0x20] sm:$0xff]
    %v156 = vld [vmem:[%s7 + $0x28] sm:$0xff]
    %v157 = vld [vmem:[%s7 + $0x30] sm:$0xff]
    %v158 = vld [vmem:[%s7 + $0x38] sm:$0xff]
    %v159 = vld [vmem:[%s8] sm:$0x1]
    %v161 = vperm.slane %v159, 0
    %v164 = vsel %vm126, %v150, 0
    %166 = vmatpush.msra.mxu0 0.0
    %167 = vmatpush.msra.mxu0 0.0
    %168 = vmatpush.msra.mxu0 0.0
    %169 = vmatpush.msra.mxu0 0.0
    %170 = vmatpush.msra.mxu0 0.0
    %171 = vmatpush.msra.mxu0 0.0
    %172 = vmatpush.msra.mxu0 0.0
    %173 = vmatpush.msra.mxu0 0.0
    %174 = vmatpush.msra.mxu0 %v158
    %175 = vmatpush.msra.mxu0 %v157
    %176 = vmatpush.msra.mxu0 %v156
    %177 = vmatpush.msra.mxu0 %v155
    %178 = vmatpush.msra.mxu0 %v154
    %179 = vmatpush.msra.mxu0 %v153
    %180 = vmatpush.msra.mxu0 %v152
    %181 = vmatpush.msra.mxu0 %v151
    %182 = vmatmul.f32.gmra.mxu0 %v164
    %v183 = vpop.f32.mrf.mxu0
    %v184 = vadd.f32 %v161, %v183
    %185 = vdwg.mxu0
    %v186 = vmax.f32 %v184, 0.0
    %v187 = vld [vmem:[%s9] sm:$0xff]
    %v188 = vld [vmem:[%s9 + $0x8] sm:$0xff]
    %v189 = vld [vmem:[%s9 + $0x10] sm:$0xff]
    %v190 = vld [vmem:[%s9 + $0x18] sm:$0xff]
    %v191 = vld [vmem:[%s9 + $0x20] sm:$0xff]
    %v192 = vld [vmem:[%s9 + $0x28] sm:$0xff]
    %v193 = vld [vmem:[%s9 + $0x30] sm:$0xff]
    %v194 = vld [vmem:[%s9 + $0x38] sm:$0xff]
    %v195 = vld [vmem:[%s9 + $0x40] sm:$0xff]
    %v196 = vld [vmem:[%s9 + $0x48] sm:$0xff]
    %v197 = vld [vmem:[%s9 + $0x50] sm:$0xff]
    %v198 = vld [vmem:[%s9 + $0x58] sm:$0xff]
    %v199 = vld [vmem:[%s9 + $0x60] sm:$0xff]
    %v200 = vld [vmem:[%s9 + $0x68] sm:$0xff]
    %v201 = vld [vmem:[%s9 + $0x70] sm:$0xff]
    %v202 = vld [vmem:[%s9 + $0x78] sm:$0xff]
    %v203 = vld [vmem:[%s10] sm:$0x1]
    %v205 = vperm.slane %v203, 0
    %207 = vmatpush.msra.mxu0 %v202
    %208 = vmatpush.msra.mxu0 %v201
    %209 = vmatpush.msra.mxu0 %v200
    %210 = vmatpush.msra.mxu0 %v199
    %211 = vmatpush.msra.mxu0 %v198
    %212 = vmatpush.msra.mxu0 %v197
    %213 = vmatpush.msra.mxu0 %v196
    %214 = vmatpush.msra.mxu0 %v195
    %215 = vmatpush.msra.mxu0 %v194
    %216 = vmatpush.msra.mxu0 %v193
    %217 = vmatpush.msra.mxu0 %v192
    %218 = vmatpush.msra.mxu0 %v191
    %219 = vmatpush.msra.mxu0 %v190
    %220 = vmatpush.msra.mxu0 %v189
    %221 = vmatpush.msra.mxu0 %v188
    %222 = vmatpush.msra.mxu0 %v187
    %223 = vmatmul.f32.gmra.mxu0 %v186
    %v224 = vpop.f32.mrf.mxu0
    %v225 = vadd.f32 %v205, %v224
    %226 = vdwg.mxu0
    %227 = vst.msk [vmem:[#allocation2] sm:$0xff] %vm48, %v225
    // Predicated region
    $region46: #{autoencoder_forward.1} parent=1 // pred_check
      _
    $region47: #{autoencoder_forward.1} parent=1 // pred_check_branch
      %229 = sbr.rel (0) target = $region49
    $region48: #{autoencoder_forward.1} parent=1 // pred_region
      %231 = vsyncadd [#allocation3], 0
      %s233 = sshll.u32 [#allocation2], 4
      %s234 = int_to_ptr.vmem [resolvable:$true] %s233
      %s235 = sshll.u32 %s11, 4
      %s236 = int_to_ptr.hbm [resolvable:$true] %s235
      %238 = dma.vmem_to_hbm [thread:$0]  %s234, 128, %s236, [#allocation3]
    $region49: #{autoencoder_forward.1} parent=1 // pred_fallthru
      _
    // Predicated region
    $region50: #{autoencoder_forward.1} parent=1 // pred_check
      _
    $region51: #{autoencoder_forward.1} parent=1 // pred_check_branch
      %240 = sbr.rel (0) target = $region53
    $region52: #{autoencoder_forward.1} parent=1 // pred_region
      %242 = dma.done [#allocation3], 128
    $region53: #{autoencoder_forward.1} parent=1 // pred_fallthru
      _
    %243 = vsyncpa [#allocation3], 1

</llo_original>
